<compile_context>
chip_gen: v7x
topology: tpu7x:2x2x1
jax: 0.10.0
libtpu: 0.0.40
codegen_flags: <defaults>
</compile_context>

<pallas_src>
import functools

import jax
import jax.numpy as jnp
from jax import lax
from jax.experimental import pallas as pl
from jax.experimental.pallas import tpu as pltpu


# ---------------------------------------------------------------------------
# VMEM budgeting (generation aware: ~128 MiB on v5e/v6e, 64 MiB per-TC on v7x)
# ---------------------------------------------------------------------------
def _vmem_budget_and_limit():
    try:
        cap = pltpu.get_tpu_info().vmem_capacity_bytes   # per-TC on v7x
    except Exception:
        cap = 64 * 1024 * 1024                           # conservative (v7x per-TC)
    vmem_limit = min((cap * 3) // 4, 96 * 1024 * 1024)   # scoped VMEM we request
    tile_budget = (vmem_limit * 7) // 8                  # headroom for compiler scratch
    return tile_budget, vmem_limit


def _divisors(n):
    ds = set()
    d = 1
    while d * d <= n:
        if n % d == 0:
            ds.add(d)
            ds.add(n // d)
        d += 1
    return sorted(ds)


def _sublane_pack(itemsize):
    # packed-sublane multiple: 8 for f32, 16 for bf16, 32 for int8/fp8
    return max(8, 32 // max(1, itemsize))


def _pick_row_tile(NG, row_cap, sub, *, need_aligned):
    """Largest divisor of NG that is <= row_cap, keeping a multi-step row grid
    when NG allows it (pipeline overlap + megacore). If need_aligned (row dim is
    the second-minor block dim), only multiples of 8 — or NG itself — are used."""
    cap = max(1, min(row_cap, NG))
    min_steps = min(8, NG)
    if min_steps >= 2:
        cap = min(cap, max(1, NG // min_steps))
    cap = max(1, cap)

    divs = _divisors(NG)

    def best(pred):
        cands = [d for d in divs if d <= cap and pred(d)]
        return max(cands) if cands else 0

    if need_aligned:
        tr = best(lambda d: d % sub == 0) or best(lambda d: d % 8 == 0)
        if tr:
            return tr
        return NG            # full-dim block is always legal
    return (best(lambda d: d % sub == 0)
            or best(lambda d: d % 8 == 0)
            or best(lambda d: True)
            or 1)


def _pick_chunk_tiles(NG, Kp, per_elem, budget, chunk_k=None):
    """(row tile, K tile) for the chunked path: K tile is a 128-multiple divisor
    of Kp; row tile is a multiple-of-8 divisor of NG (or NG itself) grown to
    fill the VMEM tile budget, preferring >= 2 row-grid steps."""
    ks128 = Kp // 128
    if chunk_k is not None:
        tk_cands = [chunk_k]
    else:
        tk_cands = sorted({128 * d for d in _divisors(ks128)}, reverse=True)

    row_divs = _divisors(NG)
    aligned = sorted([d for d in row_divs if d % 8 == 0], reverse=True)
    rows = aligned if aligned else [NG]
    multi = [r for r in rows if NG // r >= 2]
    rows = multi if multi else rows

    for tk in tk_cands:                 # biggest K chunk first (fewest accum steps)
        for tr in rows:                 # then grow rows to fill the budget
            if tr * tk * per_elem <= budget:
                return tr, tk

    # TODO(synk): last resort — relax the 8-row alignment (Mosaic masks sublanes)
    relaxed = sorted(row_divs, reverse=True)
    for tk in tk_cands:
        for tr in relaxed:
            if tr * tk * per_elem <= budget:
                return tr, tk
    return relaxed[-1], tk_cands[-1]


# ---------------------------------------------------------------------------
# Kernels
# ---------------------------------------------------------------------------
def _gn_fused_kernel(x_ref, o_ref, *, eps, inv_k, inv_km1):
    """Full-row tile: numerically-stable two-pass mean/var + fused normalize.
    Data is already in VMEM, so the second pass costs no extra HBM traffic."""
    xf = x_ref[...].astype(jnp.float32)
    red = tuple(range(1, xf.ndim))                      # reduce everything but rows
    mean = jnp.sum(xf, axis=red, keepdims=True) * inv_k
    d = xf - mean
    var = jnp.sum(d * d, axis=red, keepdims=True) * inv_km1   # unbiased (K-1)
    o_ref[...] = (d * lax.rsqrt(var + eps)).astype(o_ref.dtype)


def _gn_stats_kernel(x_ref, mean_ref, rstd_ref, sum_sc, ssq_sc, *, eps, inv_k, inv_km1):
    """K-chunked accumulation of sum / sum-of-squares; finalize on last chunk.
    Zero padding along K is stats-neutral (inv_k / inv_km1 use the true K)."""
    k = pl.program_id(1)

    @pl.when(k == 0)
    def _():
        sum_sc[...] = jnp.zeros_like(sum_sc)
        ssq_sc[...] = jnp.zeros_like(ssq_sc)

    xf = x_ref[...].astype(jnp.float32)
    sum_sc[...] += jnp.sum(xf, axis=-1, keepdims=True)
    ssq_sc[...] += jnp.sum(xf * xf, axis=-1, keepdims=True)

    @pl.when(k == pl.num_programs(1) - 1)
    def _():
        s = sum_sc[...]
        mean = s * inv_k
        # clamp: single-pass formula can go slightly negative from cancellation
        var = jnp.maximum((ssq_sc[...] - s * mean) * inv_km1, 0.0)
        mean_ref[...] = mean
        rstd_ref[...] = lax.rsqrt(var + eps)


def _gn_normalize_kernel(mean_ref, rstd_ref, x_ref, o_ref):
    xf = x_ref[...].astype(jnp.float32)
    o_ref[...] = ((xf - mean_ref[...]) * rstd_ref[...]).astype(o_ref.dtype)


# ---------------------------------------------------------------------------
# Wrappers
# ---------------------------------------------------------------------------
def _group_norm_fused(x2, NG, K, in_item, out_item, budget, vmem_limit,
                      eps, inv_k, inv_km1, out_dtype):
    # double-buffered in + out, plus ~2 f32 working copies per element
    per_row = K * (2 * in_item + 2 * out_item + 8)
    row_cap = max(1, budget // per_row)
    sub = _sublane_pack(in_item)

    kernel = functools.partial(_gn_fused_kernel, eps=eps, inv_k=inv_k, inv_km1=inv_km1)

    if K % 128 == 0:
        # 3-D layout: rows become the leading (unconstrained) block dim and the
        # sublanes are filled with K data even when N*G is small.
        ks = K // 128
        tr = _pick_row_tile(NG, row_cap, sub, need_aligned=False)
        xin = x2.reshape(NG, ks, 128)                    # free, row-major reshape
        out = pl.pallas_call(
            kernel,
            out_shape=jax.ShapeDtypeStruct((NG, ks, 128), out_dtype),
            grid=(NG // tr,),
            in_specs=[pl.BlockSpec((tr, ks, 128), lambda i: (i, 0, 0))],
            out_specs=pl.BlockSpec((tr, ks, 128), lambda i: (i, 0, 0)),
            compiler_params=pltpu.CompilerParams(
                dimension_semantics=("parallel",),
                vmem_limit_bytes=vmem_limit),
        )(xin)
        return out.reshape(NG, K)

    # Ragged K: 2-D blocks with the full K in the lane dim (legal: equals the
    # full array dim); the row dim is second-minor so it must be 8-aligned or NG.
    tr = _pick_row_tile(NG, row_cap, sub, need_aligned=True)
    if tr == NG and NG > row_cap:
        # TODO(synk): no 8-aligned row tile fits VMEM for this ragged-K shape;
        # fall back to an unaligned (still exact) row tile.
        tr = _pick_row_tile(NG, row_cap, sub, need_aligned=False)
    out = pl.pallas_call(
        kernel,
        out_shape=jax.ShapeDtypeStruct((NG, K), out_dtype),
        grid=(NG // tr,),
        in_specs=[pl.BlockSpec((tr, K), lambda i: (i, 0))],
        out_specs=pl.BlockSpec((tr, K), lambda i: (i, 0)),
        compiler_params=pltpu.CompilerParams(
            dimension_semantics=("parallel",),
            vmem_limit_bytes=vmem_limit),
    )(x2)
    return out


def _group_norm_chunked(x2, NG, K, in_item, out_item, budget, vmem_limit,
                        eps, inv_k, inv_km1, out_dtype, chunk_k):
    # Pad the lane (K) dim to a 128 multiple if needed; zeros are neutral for the
    # sum / sum-of-squares accumulators since inv_k / inv_km1 use the true K.
    Kp = ((K + 127) // 128) * 128
    if Kp != K:
        # TODO(synk): extra HBM copy; only hit when K is ragged AND a single row
        # does not fit the VMEM budget.
        x2 = jnp.pad(x2, ((0, 0), (0, Kp - K)))

    if chunk_k is not None:
        assert chunk_k % 128 == 0 and Kp % chunk_k == 0

    # ---- pass 1: per-row mean / rstd --------------------------------------
    per_elem_stats = 2 * in_item + 4                     # db-buffered input + f32 temp
    tr, tk = _pick_chunk_tiles(NG, Kp, per_elem_stats, budget, chunk_k)
    stats_kernel = functools.partial(
        _gn_stats_kernel, eps=eps, inv_k=inv_k, inv_km1=inv_km1)
    mean, rstd = pl.pallas_call(
        stats_kernel,
        out_shape=(jax.ShapeDtypeStruct((NG, 1), jnp.float32),
                   jax.ShapeDtypeStruct((NG, 1), jnp.float32)),
        grid=(NG // tr, Kp // tk),
        in_specs=[pl.BlockSpec((tr, tk), lambda i, k: (i, k))],
        out_specs=(pl.BlockSpec((tr, 1), lambda i, k: (i, 0)),
                   pl.BlockSpec((tr, 1), lambda i, k: (i, 0))),
        scratch_shapes=[pltpu.VMEM((tr, 1), jnp.float32),
                        pltpu.VMEM((tr, 1), jnp.float32)],
        compiler_params=pltpu.CompilerParams(
            dimension_semantics=("parallel", "arbitrary"),
            vmem_limit_bytes=vmem_limit),
    )(x2)

    # ---- pass 2: normalize (pure streaming; independently tiled) -----------
    per_elem_norm = 2 * in_item + 2 * out_item + 4
    tr2, tk2 = _pick_chunk_tiles(NG, Kp, per_elem_norm, budget, chunk_k)
    out2 = pl.pallas_call(
        _gn_normalize_kernel,
        out_shape=jax.ShapeDtypeStruct((NG, Kp), out_dtype),
        grid=(NG // tr2, Kp // tk2),
        in_specs=[pl.BlockSpec((tr2, 1), lambda i, k: (i, 0)),
                  pl.BlockSpec((tr2, 1), lambda i, k: (i, 0)),
                  pl.BlockSpec((tr2, tk2), lambda i, k: (i, k))],
        out_specs=pl.BlockSpec((tr2, tk2), lambda i, k: (i, k)),
        compiler_params=pltpu.CompilerParams(
            dimension_semantics=("parallel", "parallel"),
            vmem_limit_bytes=vmem_limit),
    )(mean, rstd, x2)

    if Kp != K:
        out2 = out2[:, :K]
    return out2


def group_norm(x, num_groups, eps=1e-5, *, max_tile_bytes=None,
               force_chunked=False, chunk_k=None):
    """GroupNorm forward matching the reference PyTorch module (NCHW input)."""
    N, C, H, W = x.shape
    G = num_groups
    assert C % G == 0
    NG = N * G
    K = (C // G) * H * W
    out_dtype = x.dtype
    in_item = jnp.dtype(x.dtype).itemsize
    out_item = jnp.dtype(out_dtype).itemsize

    budget, vmem_limit = _vmem_budget_and_limit()
    if max_tile_bytes is not None:
        budget = max_tile_bytes

    inv_k = 1.0 / K
    # torch Tensor.var defaults to unbiased (divide by K-1); K==1 -> NaN, same as torch
    inv_km1 = 1.0 / (K - 1) if K > 1 else float("nan")

    x2 = x.reshape(NG, K)                                # free, row-major reshape

    # Fused single-read path (2 HBM passes) whenever one row's double-buffered
    # in/out tiles + f32 working set fit VMEM; chunked 2-pass (3 HBM passes,
    # 1.5x traffic) only when a single row genuinely cannot fit.
    per_row = K * (2 * in_item + 2 * out_item + 8)
    use_chunked = force_chunked or per_row > budget

    if use_chunked:
        out2 = _group_norm_chunked(x2, NG, K, in_item, out_item, budget, vmem_limit,
                                   eps, inv_k, inv_km1, out_dtype, chunk_k)
    else:
        out2 = _group_norm_fused(x2, NG, K, in_item, out_item, budget, vmem_limit,
                                 eps, inv_k, inv_km1, out_dtype)

    return out2.reshape(N, C, H, W)


class GroupNormPallas:
    """Mirror of the PyTorch GroupNorm module. weight/bias are defined but,
    exactly like the reference forward(), are NOT applied."""

    def __init__(self, num_features, num_groups=32, eps=1e-5):
        self.weight = jnp.ones((1, num_features, 1, 1), jnp.float32)
        self.bias = jnp.zeros((1, num_features, 1, 1), jnp.float32)
        self.num_groups = num_groups
        self.eps = eps

    def __call__(self, x):
        return group_norm(x, self.num_groups, self.eps)


def _reference(x, num_groups, eps):
    # Pure-JAX reference replicating the PyTorch forward exactly.
    N, C, H, W = x.shape
    G = num_groups
    xr = x.reshape(N, G, -1).astype(jnp.float32)
    mean = jnp.mean(xr, axis=-1, keepdims=True)
    var = jnp.sum((xr - mean) ** 2, axis=-1, keepdims=True) / (xr.shape[-1] - 1)
    xn = (xr - mean) / jnp.sqrt(var + eps)
    return xn.reshape(N, C, H, W).astype(x.dtype)


if __name__ == "__main__":
    eps = 1e-5

    # 1) module-shaped input through the default fused path (3-D lane-dense
    #    layout, multi-step "parallel" row grid, no padding copies)
    N, C, H, W, G = 2, 4, 16, 16, 2
    x = jax.random.normal(jax.random.PRNGKey(0), (N, C, H, W), dtype=jnp.float32)
    gn = GroupNormPallas(num_features=C, num_groups=G, eps=eps)
    out = jax.block_until_ready(gn(x))
    ref = _reference(x, G, eps)
    assert out.shape == x.shape and out.dtype == x.dtype
    assert jnp.allclose(out, ref, atol=1e-4, rtol=1e-4), "fused path mismatch"

    # 2) multi-row tiles with a row tile that divides N*G exactly
    N2, C2, H2, W2, G2 = 4, 8, 8, 8, 4            # NG = 16, K = 128
    x2 = jax.random.normal(jax.random.PRNGKey(1), (N2, C2, H2, W2), dtype=jnp.float32)
    out2 = jax.block_until_ready(group_norm(x2, G2, eps))
    assert jnp.allclose(out2, _reference(x2, G2, eps), atol=1e-4, rtol=1e-4), \
        "row-tiled path mismatch"

    # 3) forced K-chunked accumulator path (stats pass + normalize pass)
    out3 = jax.block_until_ready(group_norm(x, G, eps, force_chunked=True, chunk_k=128))
    assert jnp.allclose(out3, ref, atol=1e-4, rtol=1e-4), "chunked path mismatch"

    # 4) ragged K (K % 128 != 0) fused branch
    N4, C4, H4, W4, G4 = 2, 6, 5, 7, 3            # NG = 6, K = 70
    x4 = jax.random.normal(jax.random.PRNGKey(2), (N4, C4, H4, W4), dtype=jnp.float32)
    out4 = jax.block_until_ready(group_norm(x4, G4, eps))
    assert jnp.allclose(out4, _reference(x4, G4, eps), atol=1e-4, rtol=1e-4), \
        "ragged-K fused path mismatch"

    # 5) bf16 input (sublane-pack-aware tiling, f32 statistics in-kernel)
    x5 = jax.random.normal(jax.random.PRNGKey(3), (2, 8, 8, 8), dtype=jnp.bfloat16)
    out5 = jax.block_until_ready(group_norm(x5, 4, eps))
    ref5 = _reference(x5, 4, eps)
    assert out5.dtype == jnp.bfloat16
    assert jnp.allclose(out5.astype(jnp.float32), ref5.astype(jnp.float32),
                        atol=3e-2, rtol=3e-2), "bf16 path mismatch"

    print("KERNEL_OK")
</pallas_src>

<mosaic_0001>
module attributes {stable_mosaic.version = 11 : i64} {
  func.func @_gn_fused_kernel(%arg0: i32, %arg1: memref<1x4x128xf32, #tpu.memory_space<vmem>>, %arg2: memref<1x4x128xf32, #tpu.memory_space<vmem>>) attributes {dimension_semantics = [#tpu.dimension_semantics<parallel>], iteration_bounds = array<i64: 4>, scalar_prefetch = 0 : i64, scratch_operands = 0 : i64, tpu.core_type = #tpu.core_type<tc>, window_params = [{transform_indices = @transform_0, window_bounds = array<i64: 1, 4, 128>}, {transform_indices = @transform_1, window_bounds = array<i64: 1, 4, 128>}]} {
    %c0 = arith.constant 0 : index
    %c0_0 = arith.constant 0 : index
    %c0_1 = arith.constant 0 : index
    %0 = vector.load %arg1[%c0, %c0_0, %c0_1] : memref<1x4x128xf32, #tpu.memory_space<vmem>>, vector<1x4x128xf32>
    %cst = arith.constant dense<0.000000e+00> : vector<1xf32>
    %1 = vector.multi_reduction <add>, %0, %cst [1, 2] : vector<1x4x128xf32> to vector<1xf32>
    %2 = vector.shape_cast %1 : vector<1xf32> to vector<1x1x1xf32>
    %cst_2 = arith.constant 0.001953125 : f32
    %3 = vector.broadcast %cst_2 : f32 to vector<1x1x1xf32>
    %4 = arith.mulf %2, %3 : vector<1x1x1xf32>
    %5 = vector.broadcast %4 : vector<1x1x1xf32> to vector<1x4x128xf32>
    %6 = arith.subf %0, %5 : vector<1x4x128xf32>
    %7 = arith.mulf %6, %6 : vector<1x4x128xf32>
    %cst_3 = arith.constant dense<0.000000e+00> : vector<1xf32>
    %8 = vector.multi_reduction <add>, %7, %cst_3 [1, 2] : vector<1x4x128xf32> to vector<1xf32>
    %9 = vector.shape_cast %8 : vector<1xf32> to vector<1x1x1xf32>
    %cst_4 = arith.constant 0.00195694715 : f32
    %10 = vector.broadcast %cst_4 : f32 to vector<1x1x1xf32>
    %11 = arith.mulf %9, %10 : vector<1x1x1xf32>
    %cst_5 = arith.constant 9.99999974E-6 : f32
    %12 = vector.broadcast %cst_5 : f32 to vector<1x1x1xf32>
    %13 = arith.addf %11, %12 : vector<1x1x1xf32>
    %14 = math.rsqrt %13 : vector<1x1x1xf32>
    %15 = vector.broadcast %14 : vector<1x1x1xf32> to vector<1x4x128xf32>
    %16 = arith.mulf %6, %15 : vector<1x4x128xf32>
    %c0_6 = arith.constant 0 : index
    %c0_7 = arith.constant 0 : index
    %c0_8 = arith.constant 0 : index
    %17 = vector.load %arg2[%c0_6, %c0_7, %c0_8] : memref<1x4x128xf32, #tpu.memory_space<vmem>>, vector<1x4x128xf32>
    tpu.vector_store %arg2[%c0_6, %c0_7, %c0_8], %16 {strides = array<i32>} : memref<1x4x128xf32, #tpu.memory_space<vmem>>, vector<1x4x128xf32>,
    return
  }
  func.func @transform_0(%arg0: i32) -> (i32, i32, i32) {
    %c0_i32 = arith.constant 0 : i32
    %c0_i32_0 = arith.constant 0 : i32
    %c0_i32_1 = arith.constant 0 : i32
    return %arg0, %c0_i32, %c0_i32_0 : i32, i32, i32
  }
  func.func @transform_1(%arg0: i32) -> (i32, i32, i32) {
    %c0_i32 = arith.constant 0 : i32
    %c0_i32_0 = arith.constant 0 : i32
    %c0_i32_1 = arith.constant 0 : i32
    return %arg0, %c0_i32, %c0_i32_0 : i32, i32, i32
  }
}

</mosaic_0001>

<llo_original>
// kernel: tpu_custom_call.1
$region0: #{tpu_custom_call.1}
  #allocation0 [shape = 'u32[]', space=smem, size = 0x4, offset = 0x4, fixed_abs, tag = 'smem constant byte address 0x4 - core index']
  #allocation1 [shape = 'u32[144,128]{1,0:T(1,128)}', space=vmem, size = 0x12000, scoped, tag = 'internal scratch']
  %s0 = inlined_call_operand.hbm [shape: f32[4,4,128], index: 0, kind: input, shape index: {}]
  %s1 = inlined_call_operand.hbm [shape: f32[4,4,128], index: 1, kind: output, shape index: {}]
  %s2 = sld [smem:[#allocation0]]
  $region41: #{tpu_custom_call.1} parent=0
    _
  %s4 = ssub.s32 1, %s2
  %s5 = scalar_select 0, %s4, %s2
  $region1: #{tpu_custom_call.1} parent=0
    #allocation2 [shape = 'u8[4096]{0}', space=vmem, size = 0x1000, scoped, tag = 'input window, operand 0']
    #allocation3 [shape = 's32[2]{0}', space=sflag, size = 0x8, scoped, tag = 'scoped memory for tpu_custom_call.1']
    #allocation4 [shape = 's32[2]{0}', space=sflag, size = 0x8, scoped, tag = 'scoped memory for tpu_custom_call.1']
    #allocation5 [shape = 'u8[4096]{0}', space=vmem, size = 0x1000, scoped, tag = 'output window, operand 0']
    %6 = vsyncpa [#allocation3], 0
    %s7 = scalar_lea.sflag [#allocation3], 1
    %8 = vsyncpa %s7, 0
    %9 = vsyncpa [#allocation4], 0
    %s10 = scalar_lea.sflag [#allocation4], 1
    %11 = vsyncpa %s10, 0
    loop: start=0, step=1, limit=6
    $region2: #{tpu_custom_call.1} parent=1 // loop_pre_header
      _
    $region3: #{tpu_custom_call.1} parent=1 // loop_header
      %s13 = sphi 0, %s17
      %p14 = scmp.ge.s32.totalorder %s13, 6
      %s23 = sphi 0, %s25
      %s26 = sphi 0, %s23
      %s27 = sphi 0, %s26
      %s43 = sphi 0, %s27
      %s49 = sphi 0, %s51
      %s52 = sphi 0, %s49
      %s53 = sphi 0, %s52
      %s69 = sphi 0, %s53
    $region4: #{tpu_custom_call.1} parent=1 // loop_header_branch
      %16 = sbr.rel (%p14) target = $region8
    $region5: #{tpu_custom_call.1} parent=1 // loop_body
      %s18 = ssub.s32 %s13, 1
      %s19 = ssub.s32 %s13, 2
      %s20 = sadd.s32 %s13, 1
      %s21 = ssub.s32 %s13, %s20
      %p22 = scmp.eq.s32.totalorder %s21, 0
      %s24 = sadd.s32 %s23, 1
      %s25 = scalar_select %p22, %s23, %s24
      %p28 = pneg %p22
      %p29 = scmp.eq.s32.totalorder %s13, 3
      %p30 = por %p28, %p29
      %p31 = scmp.ne.s32.totalorder %s23, %s26
      %p32 = scmp.eq.s32.totalorder %s13, 0
      %p33 = por %p31, %p32
      %p34 = scmp.ne.s32.totalorder %s23, %s26
      %p35 = scmp.eq.s32.totalorder %s18, 3
      %p36 = por %p34, %p35
      %p37 = scmp.ne.s32.totalorder %s26, %s27
      %p38 = scmp.eq.s32.totalorder %s18, 0
      %p39 = por %p37, %p38
      %p40 = scmp.ne.s32.totalorder %s26, %s27
      %p41 = scmp.eq.s32.totalorder %s19, 3
      %p42 = por %p40, %p41
      %p44 = scmp.ne.s32.totalorder %s27, %s43
      %p45 = scmp.eq.s32.totalorder %s19, 0
      %p46 = por %p44, %p45
      %s47 = ssub.s32 %s13, %s20
      %p48 = scmp.eq.s32.totalorder %s47, 0
      %s50 = sadd.s32 %s49, 1
      %s51 = scalar_select %p48, %s49, %s50
      %p54 = pneg %p48
      %p55 = scmp.eq.s32.totalorder %s13, 3
      %p56 = por %p54, %p55
      %p57 = scmp.ne.s32.totalorder %s49, %s52
      %p58 = scmp.eq.s32.totalorder %s13, 0
      %p59 = por %p57, %p58
      %p60 = scmp.ne.s32.totalorder %s49, %s52
      %p61 = scmp.eq.s32.totalorder %s18, 3
      %p62 = por %p60, %p61
      %p63 = scmp.ne.s32.totalorder %s52, %s53
      %p64 = scmp.eq.s32.totalorder %s18, 0
      %p65 = por %p63, %p64
      %p66 = scmp.ne.s32.totalorder %s52, %s53
      %p67 = scmp.eq.s32.totalorder %s19, 3
      %p68 = por %p66, %p67
      %p70 = scmp.ne.s32.totalorder %s53, %s69
      %p71 = scmp.eq.s32.totalorder %s19, 0
      %p72 = por %p70, %p71
      %p73 = scmp.le.s32.totalorder 1, %s13
      %p74 = scmp.lt.s32.totalorder %s13, 5
      %p75 = pnand %p73, %p74
      %p76 = pneg %p75
      // Predicated region
      $region9: #{tpu_custom_call.1} parent=5 // pred_check
        _
      $region10: #{tpu_custom_call.1} parent=5 // pred_check_branch
        %78 = sbr.rel (%p75) target = $region12
      $region11: #{tpu_custom_call.1} parent=5 // pred_region
        %s79 = ssub.s32 %s13, 1
      $region12: #{tpu_custom_call.1} parent=5 // pred_fallthru
        _
      %p80 = scmp.lt.s32.totalorder %s13, 4
      // Predicated region
      $region13: #{tpu_custom_call.1} parent=5 // pred_check
        %p81 = pneg %p80
      $region14: #{tpu_custom_call.1} parent=5 // pred_check_branch
        %83 = sbr.rel (%p81) target = $region16
      $region15: #{tpu_custom_call.1} parent=5 // pred_region
        // Predicated region
        $region17: #{tpu_custom_call.1} parent=15 // pred_check
          %p84 = pneg %p33
        $region18: #{tpu_custom_call.1} parent=15 // pred_check_branch
          %86 = sbr.rel (%p84) target = $region20
        $region19: #{tpu_custom_call.1} parent=15 // pred_region
          %s87 = sand.u32 %s23, 1
          %s88 = scalar_lea.sflag [#allocation3], %s87
          %s89 = sand.u32 %s23, 1
          %s90 = smul.addr %s89, 4
          %s91 = scalar_lea.vmem [#allocation2], %s90
          %s93 = ssub.s32 64, 64
          %94 = vsyncadd %s88, %s93
          %s95 = smul.addr %s13, 64
          %s96 = scalar_lea.hbm %s0, %s95
          %s98 = sshll.u32 %s91, 4
          %s99 = int_to_ptr.vmem [resolvable:$true] %s98
          %101 = dma.hbm_to_vmem [thread:$0]  %s96, 64, %s99, %s88
        $region20: #{tpu_custom_call.1} parent=15 // pred_fallthru
          _
      $region16: #{tpu_custom_call.1} parent=5 // pred_fallthru
        _
      %p102 = scmp.le.s32.totalorder 1, %s13
      %p103 = scmp.lt.s32.totalorder %s13, 5
      %p104 = pnand %p102, %p103
      %p105 = pneg %p104
      // Predicated region
      $region21: #{tpu_custom_call.1} parent=5 // pred_check
        _
      $region22: #{tpu_custom_call.1} parent=5 // pred_check_branch
        %107 = sbr.rel (%p104) target = $region24
      $region23: #{tpu_custom_call.1} parent=5 // pred_region
        %s108 = ssub.s32 %s13, 1
        %s109 = sand.u32 %s26, 1
        %s110 = scalar_lea.sflag [#allocation3], %s109
        %s111 = sand.u32 %s26, 1
        %s112 = smul.addr %s111, 4
        %s113 = scalar_lea.vmem [#allocation2], %s112
        // Predicated region
        $region25: #{tpu_custom_call.1} parent=23 // pred_check
          %p114 = pneg %p39
        $region26: #{tpu_custom_call.1} parent=23 // pred_check_branch
          %116 = sbr.rel (%p114) target = $region28
        $region27: #{tpu_custom_call.1} parent=23 // pred_region
          %117 = dma.done %s110, 64
        $region28: #{tpu_custom_call.1} parent=23 // pred_fallthru
          _
        %s118 = sand.u32 %s26, 1
        %s119 = scalar_lea.sflag [#allocation3], %s118
        %s120 = sand.u32 %s26, 1
        %s121 = smul.addr %s120, 4
        %s122 = scalar_lea.vmem [#allocation2], %s121
        %p123 = pneg %p39
        %p124 = pneg %p36
        %p125 = pneg %p65
        %p126 = pneg %p62
        %s127 = sand.u32 %s52, 1
        %s128 = scalar_lea.sflag [#allocation4], %s127
        %s129 = sand.u32 %s52, 1
        %s130 = smul.addr %s129, 4
        %s131 = scalar_lea.vmem [#allocation5], %s130
        %v132 = vld [vmem:[%s113] sm:$0xf]
        %vm133 = vcmask 1043456
        %v134 = vsel %vm133, %v132, 0.0
        %135 = vadd.xlane.f32.xlu0 %v134
        %v136 = vpop.xlane.xlu0 %135
        %v137 = vrot.slane %v136, 4
        %v138 = vadd.f32 %v136, %v137
        %v139 = vrot.slane %v138, 2
        %v140 = vadd.f32 %v138, %v139
        %v141 = vrot.slane %v140, 1
        %v142 = vadd.f32 %v140, %v141
        %v143 = vmul.f32 %v142, 0.001953125
        %v144 = vsub.f32 %v132, %v143
        %v145 = vmul.f32 %v144, %v144
        %v146 = vsel %vm133, %v145, 0.0
        %147 = vadd.xlane.f32.xlu0 %v146
        %v148 = vpop.xlane.xlu0 %147
        %v149 = vrot.slane %v148, 4
        %v150 = vadd.f32 %v148, %v149
        %v151 = vrot.slane %v150, 2
        %v152 = vadd.f32 %v150, %v151
        %v153 = vrot.slane %v152, 1
        %v154 = vadd.f32 %v152, %v153
        %v155 = vmul.f32 %v154, 0.0019569471
        %v156 = vadd.f32 %v155, 1e-05
        %v157 = vrsqrt.pop %v156
        %v158 = vmul.f32 %v144, %v157
        %159 = vst [vmem:[%s131] sm:$0xf] %v158
        %s160 = sand.u32 %s52, 1
        %s161 = scalar_lea.sflag [#allocation4], %s160
        %s162 = sand.u32 %s52, 1
        %s163 = smul.addr %s162, 4
        %s164 = scalar_lea.vmem [#allocation5], %s163
        // Predicated region
        $region29: #{tpu_custom_call.1} parent=23 // pred_check
          %p165 = pneg %p62
        $region30: #{tpu_custom_call.1} parent=23 // pred_check_branch
          %167 = sbr.rel (%p165) target = $region32
        $region31: #{tpu_custom_call.1} parent=23 // pred_region
          %s169 = ssub.s32 64, 64
          %170 = vsyncadd %s161, %s169
          %s171 = smul.addr %s18, 64
          %s172 = scalar_lea.hbm %s1, %s171
          %s174 = sshll.u32 %s164, 4
          %s175 = int_to_ptr.vmem [resolvable:$true] %s174
          %177 = dma.vmem_to_hbm [thread:$0]  %s175, 64, %s172, %s161
        $region32: #{tpu_custom_call.1} parent=23 // pred_fallthru
          _
      $region24: #{tpu_custom_call.1} parent=5 // pred_fallthru
        _
      %p178 = scmp.le.s32.totalorder 2, %s13
      // Predicated region
      $region33: #{tpu_custom_call.1} parent=5 // pred_check
        %p179 = pneg %p178
      $region34: #{tpu_custom_call.1} parent=5 // pred_check_branch
        %181 = sbr.rel (%p179) target = $region36
      $region35: #{tpu_custom_call.1} parent=5 // pred_region
        %s182 = ssub.s32 %s13, 2
        // Predicated region
        $region37: #{tpu_custom_call.1} parent=35 // pred_check
          %p183 = pneg %p68
        $region38: #{tpu_custom_call.1} parent=35 // pred_check_branch
          %185 = sbr.rel (%p183) target = $region40
        $region39: #{tpu_custom_call.1} parent=35 // pred_region
          %s186 = sand.u32 %s53, 1
          %s187 = scalar_lea.sflag [#allocation4], %s186
          %s188 = sand.u32 %s53, 1
          %s189 = smul.addr %s188, 4
          %s190 = scalar_lea.vmem [#allocation5], %s189
          %191 = dma.done %s187, 64
        $region40: #{tpu_custom_call.1} parent=35 // pred_fallthru
          _
      $region36: #{tpu_custom_call.1} parent=5 // pred_fallthru
        _
    $region6: #{tpu_custom_call.1} parent=1 // loop_footer
      %s17 = sadd.s32 1, %s13
    $region7: #{tpu_custom_call.1} parent=1 // loop_footer_branch
      %12 = sbr.rel target = $region3
    $region8: #{tpu_custom_call.1} parent=1 // loop_exit
      _
    %192 = vsyncpa [#allocation3], 1
    %s193 = scalar_lea.sflag [#allocation3], 1
    %194 = vsyncpa %s193, 1
    %195 = vsyncpa [#allocation4], 1
    %s196 = scalar_lea.sflag [#allocation4], 1
    %197 = vsyncpa %s196, 1

</llo_original>
